<compile_context>
chip_gen: v5e
topology: v5e:2x2
jax: 0.10.0
libtpu: 0.0.40
codegen_flags: <defaults>
</compile_context>

<pallas_src>
import jax
import jax.numpy as jnp
from jax.experimental import pallas as pl
from jax.experimental.pallas import tpu as pltpu

QBITS = 8
QMAX = 2.0 ** (QBITS - 1) - 1.0  # 127
LANE = 128


# ----------------------------- kernel -------------------------------------- #

def fused_conv_pool_kernel(x_ref, w_ref, comb_ref, o_ref):
    """1x1 conv on the int8 activation grid + quant(s2) + 2x2 avg-pool.

    x_ref:    (4, TM, Cinp) int8  quadrant-major integer activation grid
    w_ref:    (Cinp, Cp)    bf16  integer weight grid (exact in bf16)
    comb_ref: (1, Cp)       f32   per-out-channel s1 * w_sf / s2
    o_ref:    (TM, Cp)      int8  pooled result on the s2 integer grid
    """
    tm = o_ref.shape[0]
    cinp = x_ref.shape[2]

    # One MXU pass over all four quadrants (single weight stage, no per-matmul
    # fill/drain, one vectorized epilogue).
    xf = x_ref[...].reshape(4 * tm, cinp).astype(jnp.bfloat16)
    z = jnp.dot(xf, w_ref[...], preferred_element_type=jnp.float32)

    # QuantAct2: integer grid at fixed scale s2 (comb = s1 * w_sf / s2).
    z_int = jnp.clip(jnp.round(z * comb_ref[...]), -QMAX, QMAX)

    # QuantAveragePool2d(2,2): sum the four quadrant slabs (3 VPU adds) and
    # integer-average with HAWQ's floor(x + 0.5) rounding.
    acc = (z_int[:tm] + z_int[tm:2 * tm]
           + z_int[2 * tm:3 * tm] + z_int[3 * tm:])
    o_ref[...] = jnp.floor(acc * 0.25 + 0.5).astype(jnp.int8)


# ----------------------------- wrapper ------------------------------------- #

def _vmem_capacity_bytes():
    try:
        return int(pltpu.get_tpu_info().vmem_capacity_bytes)
    except Exception:
        return 64 * 1024 * 1024  # conservative default (v7x per-TC)


def _pick_tm(m_rows, cinp, cp, vmem_cap):
    """Row-tile size, derived from the chip's VMEM capacity.

    Rough per-row VMEM bytes at TM rows/step:
      double-buffered int8 input tile : 2 * 4 * cinp
      double-buffered int8 output tile: 2 * cp
      f32 matmul result + epilogue temporaries (~3 x (4*TM, Cp) f32)
    """
    per_row = 2 * 4 * cinp + 2 * cp + 3 * 16 * cp
    budget = min(vmem_cap // 3, 24 * 1024 * 1024)
    tm = max(32, min(4096, (budget // per_row) // 32 * 32))
    mp = ((m_rows + 31) // 32) * 32
    tm = min(tm, mp)
    # Keep >= 2 grid steps so v7x megacore + double buffering have work.
    while (mp + tm - 1) // tm < 2 and tm > 32:
        tm = max(32, (tm // 2) // 32 * 32)
    return int(tm)


def q_transition_forward(x_nchw, params):
    N, Cin, H, W = x_nchw.shape
    Cout = params['w_int'].shape[1]
    Ho, Wo = H // 2, W // 2
    M2 = N * Ho * Wo

    # Exactness of the integer matmul in f32/bf16 accumulation: Cin*127^2 < 2^24.
    assert Cin <= 1040, "integer grid not exact in f32 accumulation for this Cin"

    Cp = ((Cout + LANE - 1) // LANE) * LANE              # lane-dense output
    Cinp = Cin if Cin <= LANE else ((Cin + LANE - 1) // LANE) * LANE

    # ---- producer-side relayout + BN + ReLU + QuantAct1 (fuses in XLA) ---- #
    # Fold BatchNorm and 1/s1 into a single per-channel affine (ReLU commutes
    # with the positive 1/s1 scale) and quantize to the exact int8 [0,127] grid.
    # TODO(synk): QuantAct_Daq's runtime min/max EMA calibration (runtime_helper)
    # is not modeled; the kernel consumes fixed calibrated scales s1/s2.
    bn_scale = params['gamma'] / jnp.sqrt(params['running_var'] + params['eps'])
    bn_bias = params['beta'] - params['running_mean'] * bn_scale
    a1 = (bn_scale / params['s1']).astype(jnp.float32)
    b1 = (bn_bias / params['s1']).astype(jnp.float32)

    # NCHW -> quadrant-major (4, N*Ho*Wo, Cin): each output pixel's four 2x2
    # contributors become four row-aligned slabs (pool == 3 VPU adds).
    xq = x_nchw.astype(jnp.float32).reshape(N, Cin, Ho, 2, Wo, 2)
    xq = jnp.transpose(xq, (3, 5, 0, 2, 4, 1)).reshape(4, M2, Cin)
    y = jnp.maximum(xq * a1 + b1, 0.0)
    y_i8 = jnp.clip(jnp.round(y), 0.0, QMAX).astype(jnp.int8)

    vmem_cap = _vmem_capacity_bytes()
    TM = _pick_tm(M2, Cinp, Cp, vmem_cap)
    Mp = ((M2 + TM - 1) // TM) * TM
    if Mp != M2 or Cinp != Cin:
        y_i8 = jnp.pad(y_i8, ((0, 0), (0, Mp - M2), (0, Cinp - Cin)))

    # Integer weight grid (exact in bf16), zero-padded to (Cinp, Cp).
    w_bf = jnp.pad(params['w_int'].astype(jnp.float32),
                   ((0, Cinp - Cin), (0, Cp - Cout))).astype(jnp.bfloat16)
    # Combined per-out-channel rescale: int_acc * s1 * w_sf / s2 -> s2 grid.
    comb = (params['s1'] * params['w_sf'] / params['s2']).reshape(-1)
    comb = jnp.pad(comb, (0, Cp - Cout)).reshape(1, Cp).astype(jnp.float32)

    vmem_limit = int(min(max(32 * 1024 * 1024, int(vmem_cap * 0.7)),
                         64 * 1024 * 1024))

    out_i8 = pl.pallas_call(
        fused_conv_pool_kernel,
        out_shape=jax.ShapeDtypeStruct((Mp, Cp), jnp.int8),
        grid=(Mp // TM,),
        in_specs=[
            pl.BlockSpec((4, TM, Cinp), lambda i: (0, i, 0)),   # int8 acts
            pl.BlockSpec((Cinp, Cp), lambda i: (0, 0)),         # bf16 weights
            pl.BlockSpec((1, Cp), lambda i: (0, 0)),            # comb scale
        ],
        out_specs=pl.BlockSpec((TM, Cp), lambda i: (i, 0)),
        compiler_params=pltpu.CompilerParams(
            dimension_semantics=("parallel",),
            vmem_limit_bytes=vmem_limit),
    )(y_i8, w_bf, comb)

    # Dequantize (x_int * s2), drop padding, return NCHW like the PyTorch module.
    out = out_i8[:M2, :Cout].astype(jnp.float32) * params['s2']
    out = out.reshape(N, Ho, Wo, Cout)
    return jnp.transpose(out, (0, 3, 1, 2)), params['s2']


# --------------------------- reference (plain JAX) -------------------------- #

def reference_forward(x_nchw, params):
    x = jnp.transpose(x_nchw, (0, 2, 3, 1)).astype(jnp.float32)
    scale = params['gamma'] / jnp.sqrt(params['running_var'] + params['eps'])
    y = (x - params['running_mean']) * scale + params['beta']
    y = jnp.maximum(y, 0.0)
    yq = jnp.clip(jnp.round(y / params['s1']), -QMAX, QMAX) * params['s1']
    w_q = params['w_int'] * params['w_sf'][None, :]          # fake-quantized
    z = jnp.einsum('nhwc,co->nhwo', yq, w_q)
    zi = jnp.clip(jnp.round(z / params['s2']), -QMAX, QMAX)  # s2 integer grid
    N, H, W, Co = zi.shape
    s = zi.reshape(N, H // 2, 2, W // 2, 2, Co).sum(axis=(2, 4))
    pooled = jnp.floor(s * 0.25 + 0.5) * params['s2']        # HAWQ int averaging
    return jnp.transpose(pooled, (0, 3, 1, 2)), params['s2']


# ------------------------------- main --------------------------------------- #

if __name__ == "__main__":
    key = jax.random.PRNGKey(0)
    N, Cin, H, W = 2, 8, 16, 16
    Cout = Cin // 2  # DenseNet transition halves the channel count

    k = jax.random.split(key, 6)
    x = jax.random.normal(k[0], (N, Cin, H, W), jnp.float32)

    gamma = jax.random.uniform(k[1], (Cin,), jnp.float32, 0.5, 1.5)
    beta = 0.1 * jax.random.normal(k[2], (Cin,), jnp.float32)
    running_mean = 0.1 * jax.random.normal(k[3], (Cin,), jnp.float32)
    running_var = jax.random.uniform(k[4], (Cin,), jnp.float32, 0.5, 1.5)
    eps = jnp.float32(1e-5)

    # 1x1 conv weight (Cout, Cin, 1, 1), no bias; per-out-channel symmetric quant
    w = 0.2 * jax.random.normal(k[5], (Cout, Cin, 1, 1), jnp.float32)
    w2d = w.reshape(Cout, Cin)
    w_sf = jnp.maximum(jnp.max(jnp.abs(w2d), axis=1), 1e-8) / QMAX   # (Cout,)
    w_int = jnp.round(w2d / w_sf[:, None]).T                         # (Cin, Cout)

    # "Calibration" of the fixed activation scales (stands in for HAWQ's stored
    # x_min/x_max of QuantAct_Daq / runtime_helper).
    x_nhwc = jnp.transpose(x, (0, 2, 3, 1))
    bn_out = (x_nhwc - running_mean) * (gamma / jnp.sqrt(running_var + eps)) + beta
    relu_out = jnp.maximum(bn_out, 0.0)
    s1 = jnp.maximum(jnp.max(jnp.abs(relu_out)), 1e-8) / QMAX
    yq = jnp.clip(jnp.round(relu_out / s1), -QMAX, QMAX) * s1
    conv_out = jnp.einsum('nhwc,co->nhwo', yq, w_int * w_sf[None, :])
    s2 = jnp.maximum(jnp.max(jnp.abs(conv_out)), 1e-8) / QMAX

    params = dict(gamma=gamma, beta=beta, running_mean=running_mean,
                  running_var=running_var, eps=eps,
                  w_int=w_int, w_sf=w_sf, s1=s1, s2=s2)

    out, act_sf = q_transition_forward(x, params)
    out = jax.block_until_ready(out)

    ref, _ = reference_forward(x, params)
    max_err = float(jnp.max(jnp.abs(out - ref)))
    assert out.shape == (N, Cout, H // 2, W // 2), out.shape
    # allow up to one quantization step of disagreement at rounding boundaries
    assert max_err <= float(s2) * 1.5 + 1e-6, f"max_err={max_err}"

    print("KERNEL_OK")
</pallas_src>

<mosaic_0001>
module attributes {stable_mosaic.version = 11 : i64} {
  func.func @fused_conv_pool_kernel(%arg0: i32, %arg1: memref<4x64x8xi8, #tpu.memory_space<vmem>>, %arg2: memref<8x128xbf16, #tpu.memory_space<vmem>>, %arg3: memref<1x128xf32, #tpu.memory_space<vmem>>, %arg4: memref<64x128xi8, #tpu.memory_space<vmem>>) attributes {dimension_semantics = [#tpu.dimension_semantics<parallel>], iteration_bounds = array<i64: 2>, scalar_prefetch = 0 : i64, scratch_operands = 0 : i64, tpu.core_type = #tpu.core_type<tc>, window_params = [{transform_indices = @transform_0, window_bounds = array<i64: 4, 64, 8>}, {pipeline_mode = #tpu.pipeline_mode<synchronous>, transform_indices = @transform_1, window_bounds = array<i64: 8, 128>}, {pipeline_mode = #tpu.pipeline_mode<synchronous>, transform_indices = @transform_2, window_bounds = array<i64: 1, 128>}, {transform_indices = @transform_3, window_bounds = array<i64: 64, 128>}]} {
    %c0 = arith.constant 0 : index
    %c0_0 = arith.constant 0 : index
    %c0_1 = arith.constant 0 : index
    %0 = vector.load %arg1[%c0, %c0_0, %c0_1] : memref<4x64x8xi8, #tpu.memory_space<vmem>>, vector<4x64x8xi8>
    %1 = vector.shape_cast %0 : vector<4x64x8xi8> to vector<256x8xi8>
    %2 = arith.sitofp %1 : vector<256x8xi8> to vector<256x8xbf16>
    %c0_2 = arith.constant 0 : index
    %c0_3 = arith.constant 0 : index
    %3 = vector.load %arg2[%c0_2, %c0_3] : memref<8x128xbf16, #tpu.memory_space<vmem>>, vector<8x128xbf16>
    %cst = arith.constant dense<0.000000e+00> : vector<256x128xf32>
    %4 = tpu.matmul %2, %3, %cst {dimension_numbers = #tpu.dot_dimension_numbers<[1], [0], [0], [1], [0, 0, 1, 1], [], []>} : vector<256x8xbf16>, vector<8x128xbf16>, vector<256x128xf32> -> vector<256x128xf32>
    %c0_4 = arith.constant 0 : index
    %c0_5 = arith.constant 0 : index
    %5 = vector.load %arg3[%c0_4, %c0_5] : memref<1x128xf32, #tpu.memory_space<vmem>>, vector<1x128xf32>
    %6 = vector.broadcast %5 : vector<1x128xf32> to vector<256x128xf32>
    %7 = arith.mulf %4, %6 : vector<256x128xf32>
    %8 = math.roundeven %7 : vector<256x128xf32>
    %cst_6 = arith.constant -1.270000e+02 : f32
    %cst_7 = arith.constant 1.270000e+02 : f32
    %9 = vector.broadcast %cst_6 : f32 to vector<256x128xf32>
    %10 = arith.maximumf %9, %8 : vector<256x128xf32>
    %11 = vector.broadcast %cst_7 : f32 to vector<256x128xf32>
    %12 = arith.minimumf %11, %10 : vector<256x128xf32>
    %13 = vector.extract_strided_slice %12 {offsets = [0, 0], sizes = [64, 128], strides = [1, 1]} : vector<256x128xf32> to vector<64x128xf32>
    %14 = vector.extract_strided_slice %12 {offsets = [64, 0], sizes = [64, 128], strides = [1, 1]} : vector<256x128xf32> to vector<64x128xf32>
    %15 = arith.addf %13, %14 : vector<64x128xf32>
    %16 = vector.extract_strided_slice %12 {offsets = [128, 0], sizes = [64, 128], strides = [1, 1]} : vector<256x128xf32> to vector<64x128xf32>
    %17 = arith.addf %15, %16 : vector<64x128xf32>
    %18 = vector.extract_strided_slice %12 {offsets = [192, 0], sizes = [64, 128], strides = [1, 1]} : vector<256x128xf32> to vector<64x128xf32>
    %19 = arith.addf %17, %18 : vector<64x128xf32>
    %cst_8 = arith.constant 2.500000e-01 : f32
    %20 = vector.broadcast %cst_8 : f32 to vector<64x128xf32>
    %21 = arith.mulf %19, %20 : vector<64x128xf32>
    %cst_9 = arith.constant 5.000000e-01 : f32
    %22 = vector.broadcast %cst_9 : f32 to vector<64x128xf32>
    %23 = arith.addf %21, %22 : vector<64x128xf32>
    %24 = math.floor %23 : vector<64x128xf32>
    %25 = arith.fptosi %24 : vector<64x128xf32> to vector<64x128xi8>
    %c0_10 = arith.constant 0 : index
    %c0_11 = arith.constant 0 : index
    %26 = vector.load %arg4[%c0_10, %c0_11] : memref<64x128xi8, #tpu.memory_space<vmem>>, vector<64x128xi8>
    tpu.vector_store %arg4[%c0_10, %c0_11], %25 {strides = array<i32>} : memref<64x128xi8, #tpu.memory_space<vmem>>, vector<64x128xi8>,
    return
  }
  func.func @transform_0(%arg0: i32) -> (i32, i32, i32) {
    %c0_i32 = arith.constant 0 : i32
    %c0_i32_0 = arith.constant 0 : i32
    %c0_i32_1 = arith.constant 0 : i32
    return %c0_i32, %arg0, %c0_i32_0 : i32, i32, i32
  }
  func.func @transform_1(%arg0: i32) -> (i32, i32) {
    %c0_i32 = arith.constant 0 : i32
    %c0_i32_0 = arith.constant 0 : i32
    %c0_i32_1 = arith.constant 0 : i32
    return %c0_i32, %c0_i32_0 : i32, i32
  }
  func.func @transform_2(%arg0: i32) -> (i32, i32) {
    %c0_i32 = arith.constant 0 : i32
    %c0_i32_0 = arith.constant 0 : i32
    %c0_i32_1 = arith.constant 0 : i32
    return %c0_i32, %c0_i32_0 : i32, i32
  }
  func.func @transform_3(%arg0: i32) -> (i32, i32) {
    %c0_i32 = arith.constant 0 : i32
    %c0_i32_0 = arith.constant 0 : i32
    return %arg0, %c0_i32 : i32, i32
  }
}

</mosaic_0001>

<llo_original>
// kernel: tpu_custom_call.1
$region0: #{tpu_custom_call.1}
  #allocation0 [shape = 'u32[]', space=smem, size = 0x4, offset = 0x4, fixed_abs, tag = 'smem constant byte address 0x4 - core index']
  #allocation1 [shape = 'u32[72,128]{1,0:T(1,128)}', space=vmem, size = 0x9000, scoped, tag = 'internal scratch']
  %s0 = inlined_call_operand.vmem [shape: s8[4,128,8], index: 0, kind: input, shape index: {}]
  %s1 = inlined_call_operand.vmem [shape: bf16[8,128], index: 1, kind: input, shape index: {}]
  %s2 = inlined_call_operand.vmem [shape: f32[1,128], index: 2, kind: input, shape index: {}]
  %s3 = inlined_call_operand.hbm [shape: s8[128,128], index: 3, kind: output, shape index: {}]
  %s4 = sld [smem:[#allocation0]]
  $region86: #{tpu_custom_call.1} parent=0
    _
  %s6 = ssub.s32 1, %s4
  %s7 = scalar_select 0, %s6, %s4
  $region1: #{tpu_custom_call.1} parent=0
    #allocation2 [shape = 'u8[65536]{0}', space=vmem, size = 0x10000, scoped, tag = 'input window, operand 0']
    #allocation3 [shape = 'u8[16384]{0}', space=vmem, size = 0x4000, scoped, tag = 'output window, operand 0']
    #allocation4 [shape = 's32[2]{0}', space=sflag, size = 0x8, scoped, tag = 'scoped memory for tpu_custom_call.1']
    %8 = vsyncpa [#allocation4], 0
    %s9 = scalar_lea.sflag [#allocation4], 1
    %10 = vsyncpa %s9, 0
    loop: start=0, step=1, limit=4
    $region2: #{tpu_custom_call.1} parent=1 // loop_pre_header
      _
    $region3: #{tpu_custom_call.1} parent=1 // loop_header
      %s12 = sphi 0, %s16
      %p13 = scmp.ge.s32.totalorder %s12, 4
      %s22 = sphi 0, %s24
      %s25 = sphi 0, %s22
      %s26 = sphi 0, %s25
      %s42 = sphi 0, %s26
      %s46 = sphi 0, %s46
      %s48 = sphi 0, %s46
      %s49 = sphi 0, %s48
      %s63 = sphi 0, %s49
      %s67 = sphi 0, %s67
      %s69 = sphi 0, %s67
      %s70 = sphi 0, %s69
      %s84 = sphi 0, %s70
      %s90 = sphi 0, %s92
      %s93 = sphi 0, %s90
      %s94 = sphi 0, %s93
      %s110 = sphi 0, %s94
    $region4: #{tpu_custom_call.1} parent=1 // loop_header_branch
      %15 = sbr.rel (%p13) target = $region8
    $region5: #{tpu_custom_call.1} parent=1 // loop_body
      %s17 = ssub.s32 %s12, 1
      %s18 = ssub.s32 %s12, 2
      %s19 = sadd.s32 %s12, 1
      %s20 = ssub.s32 %s12, %s19
      %p21 = scmp.eq.s32.totalorder %s20, 0
      %s23 = sadd.s32 %s22, 1
      %s24 = scalar_select %p21, %s22, %s23
      %p27 = pneg %p21
      %p28 = scmp.eq.s32.totalorder %s12, 1
      %p29 = por %p27, %p28
      %p30 = scmp.ne.s32.totalorder %s22, %s25
      %p31 = scmp.eq.s32.totalorder %s12, 0
      %p32 = por %p30, %p31
      %p33 = scmp.ne.s32.totalorder %s22, %s25
      %p34 = scmp.eq.s32.totalorder %s17, 1
      %p35 = por %p33, %p34
      %p36 = scmp.ne.s32.totalorder %s25, %s26
      %p37 = scmp.eq.s32.totalorder %s17, 0
      %p38 = por %p36, %p37
      %p39 = scmp.ne.s32.totalorder %s25, %s26
      %p40 = scmp.eq.s32.totalorder %s18, 1
      %p41 = por %p39, %p40
      %p43 = scmp.ne.s32.totalorder %s26, %s42
      %p44 = scmp.eq.s32.totalorder %s18, 0
      %p45 = por %p43, %p44
      %s47 = sadd.s32 %s46, 1
      %p50 = scmp.eq.s32.totalorder %s12, 1
      %p51 = scmp.ne.s32.totalorder %s46, %s48
      %p52 = scmp.eq.s32.totalorder %s12, 0
      %p53 = por %p51, %p52
      %p54 = scmp.ne.s32.totalorder %s46, %s48
      %p55 = scmp.eq.s32.totalorder %s17, 1
      %p56 = por %p54, %p55
      %p57 = scmp.ne.s32.totalorder %s48, %s49
      %p58 = scmp.eq.s32.totalorder %s17, 0
      %p59 = por %p57, %p58
      %p60 = scmp.ne.s32.totalorder %s48, %s49
      %p61 = scmp.eq.s32.totalorder %s18, 1
      %p62 = por %p60, %p61
      %p64 = scmp.ne.s32.totalorder %s49, %s63
      %p65 = scmp.eq.s32.totalorder %s18, 0
      %p66 = por %p64, %p65
      %s68 = sadd.s32 %s67, 1
      %p71 = scmp.eq.s32.totalorder %s12, 1
      %p72 = scmp.ne.s32.totalorder %s67, %s69
      %p73 = scmp.eq.s32.totalorder %s12, 0
      %p74 = por %p72, %p73
      %p75 = scmp.ne.s32.totalorder %s67, %s69
      %p76 = scmp.eq.s32.totalorder %s17, 1
      %p77 = por %p75, %p76
      %p78 = scmp.ne.s32.totalorder %s69, %s70
      %p79 = scmp.eq.s32.totalorder %s17, 0
      %p80 = por %p78, %p79
      %p81 = scmp.ne.s32.totalorder %s69, %s70
      %p82 = scmp.eq.s32.totalorder %s18, 1
      %p83 = por %p81, %p82
      %p85 = scmp.ne.s32.totalorder %s70, %s84
      %p86 = scmp.eq.s32.totalorder %s18, 0
      %p87 = por %p85, %p86
      %s88 = ssub.s32 %s12, %s19
      %p89 = scmp.eq.s32.totalorder %s88, 0
      %s91 = sadd.s32 %s90, 1
      %s92 = scalar_select %p89, %s90, %s91
      %p95 = pneg %p89
      %p96 = scmp.eq.s32.totalorder %s12, 1
      %p97 = por %p95, %p96
      %p98 = scmp.ne.s32.totalorder %s90, %s93
      %p99 = scmp.eq.s32.totalorder %s12, 0
      %p100 = por %p98, %p99
      %p101 = scmp.ne.s32.totalorder %s90, %s93
      %p102 = scmp.eq.s32.totalorder %s17, 1
      %p103 = por %p101, %p102
      %p104 = scmp.ne.s32.totalorder %s93, %s94
      %p105 = scmp.eq.s32.totalorder %s17, 0
      %p106 = por %p104, %p105
      %p107 = scmp.ne.s32.totalorder %s93, %s94
      %p108 = scmp.eq.s32.totalorder %s18, 1
      %p109 = por %p107, %p108
      %p111 = scmp.ne.s32.totalorder %s94, %s110
      %p112 = scmp.eq.s32.totalorder %s18, 0
      %p113 = por %p111, %p112
      %p114 = scmp.le.s32.totalorder 1, %s12
      %p115 = scmp.lt.s32.totalorder %s12, 3
      %p116 = pnand %p114, %p115
      %p117 = pneg %p116
      // Predicated region
      $region9: #{tpu_custom_call.1} parent=5 // pred_check
        _
      $region10: #{tpu_custom_call.1} parent=5 // pred_check_branch
        %119 = sbr.rel (%p116) target = $region12
      $region11: #{tpu_custom_call.1} parent=5 // pred_region
        %s120 = ssub.s32 %s12, 1
        // Predicated region
        $region13: #{tpu_custom_call.1} parent=11 // pred_check
          %p121 = pneg %p59
        $region14: #{tpu_custom_call.1} parent=11 // pred_check_branch
          %123 = sbr.rel (%p121) target = $region16
        $region15: #{tpu_custom_call.1} parent=11 // pred_region
          _
        $region16: #{tpu_custom_call.1} parent=11 // pred_fallthru
          _
        // Predicated region
        $region17: #{tpu_custom_call.1} parent=11 // pred_check
          %p124 = pneg %p80
        $region18: #{tpu_custom_call.1} parent=11 // pred_check_branch
          %126 = sbr.rel (%p124) target = $region20
        $region19: #{tpu_custom_call.1} parent=11 // pred_region
          _
        $region20: #{tpu_custom_call.1} parent=11 // pred_fallthru
          _
      $region12: #{tpu_custom_call.1} parent=5 // pred_fallthru
        _
      %p127 = scmp.lt.s32.totalorder %s12, 2
      // Predicated region
      $region21: #{tpu_custom_call.1} parent=5 // pred_check
        %p128 = pneg %p127
      $region22: #{tpu_custom_call.1} parent=5 // pred_check_branch
        %130 = sbr.rel (%p128) target = $region24
      $region23: #{tpu_custom_call.1} parent=5 // pred_region
        // Predicated region
        $region25: #{tpu_custom_call.1} parent=23 // pred_check
          %p131 = pneg %p32
        $region26: #{tpu_custom_call.1} parent=23 // pred_check_branch
          %133 = sbr.rel (%p131) target = $region28
        $region27: #{tpu_custom_call.1} parent=23 // pred_region
          %s134 = sand.u32 %s22, 1
          %s135 = sand.u32 %s22, 1
          %s136 = smul.addr %s135, 64
          %s137 = scalar_lea.vmem [#allocation2], %s136
          %s138 = smul.u32 8, %s12
          %s139 = smul.addr %s138, 2
          %s140 = scalar_lea.vmem %s0, %s139
          // Predicated region
          $region29: #{tpu_custom_call.1} parent=27 // pred_check
            _
          $region30: #{tpu_custom_call.1} parent=27 // pred_check_branch
            %142 = sbr.rel (0) target = $region32
          $region31: #{tpu_custom_call.1} parent=27 // pred_region
            // Predicated region
            $region33: #{tpu_custom_call.1} parent=31 // pred_check
              _
            $region34: #{tpu_custom_call.1} parent=31 // pred_check_branch
              %144 = sbr.rel target = $region36
            $region35: #{tpu_custom_call.1} parent=31 // pred_region
              // Predicated region
              $region48: #{tpu_custom_call.1} parent=35 // pred_check
                _
              $region49: #{tpu_custom_call.1} parent=35 // pred_check_branch
                %222 = sbr.rel (0) target = $region51
              $region50: #{tpu_custom_call.1} parent=35 // pred_region
                loop: start=0, step=1, limit=1
                $region52: #{tpu_custom_call.1} parent=50 // loop_pre_header
                  _
                $region53: #{tpu_custom_call.1} parent=50 // loop_header
                  %s224 = sphi 0, %s228
                  %p225 = scmp.ge.s32.totalorder %s224, 1
                  %s229 = sphi %s140, %s140
                  %s230 = sphi %s137, %s137
                $region54: #{tpu_custom_call.1} parent=50 // loop_header_branch
                  %227 = sbr.rel (%p225) target = $region58
                $region55: #{tpu_custom_call.1} parent=50 // loop_body
                  _
                $region56: #{tpu_custom_call.1} parent=50 // loop_footer
                  %s228 = sadd.s32 1, %s224
                $region57: #{tpu_custom_call.1} parent=50 // loop_footer_branch
                  %223 = sbr.rel target = $region53
                $region58: #{tpu_custom_call.1} parent=50 // loop_exit
                  _
                %s232 = ssub.s32 4, 1
                loop: start=0, step=1, limit=1
                $region59: #{tpu_custom_call.1} parent=50 // loop_pre_header
                  _
                $region60: #{tpu_custom_call.1} parent=50 // loop_header
                  %s234 = sphi 0, %s238
                  %p235 = scmp.ge.s32.totalorder %s234, 1
                  %s239 = sphi %s140, %s140
                  %s240 = sphi %s137, %s137
                $region61: #{tpu_custom_call.1} parent=50 // loop_header_branch
                  %237 = sbr.rel (%p235) target = $region65
                $region62: #{tpu_custom_call.1} parent=50 // loop_body
                  %v241 = vld [vmem:[%s239] sm:%s232]
                  %242 = vst [vmem:[%s240] sm:%s232] %v241
                  %v243 = vld [vmem:[%s239 + $0x2] sm:%s232]
                  %244 = vst [vmem:[%s240 + $0x2] sm:%s232] %v243
                  %v245 = vld [vmem:[%s239 + $0x4] sm:%s232]
                  %246 = vst [vmem:[%s240 + $0x4] sm:%s232] %v245
                  %v247 = vld [vmem:[%s239 + $0x6] sm:%s232]
                  %248 = vst [vmem:[%s240 + $0x6] sm:%s232] %v247
                  %v249 = vld [vmem:[%s239 + $0x8] sm:%s232]
                  %250 = vst [vmem:[%s240 + $0x8] sm:%s232] %v249
                  %v251 = vld [vmem:[%s239 + $0xa] sm:%s232]
                  %252 = vst [vmem:[%s240 + $0xa] sm:%s232] %v251
                  %v253 = vld [vmem:[%s239 + $0xc] sm:%s232]
                  %254 = vst [vmem:[%s240 + $0xc] sm:%s232] %v253
                  %v255 = vld [vmem:[%s239 + $0xe] sm:%s232]
                  %256 = vst [vmem:[%s240 + $0xe] sm:%s232] %v255
                  %v257 = vld [vmem:[%s239 + $0x20] sm:%s232]
                  %258 = vst [vmem:[%s240 + $0x10] sm:%s232] %v257
                  %v259 = vld [vmem:[%s239 + $0x22] sm:%s232]
                  %260 = vst [vmem:[%s240 + $0x12] sm:%s232] %v259
                  %v261 = vld [vmem:[%s239 + $0x24] sm:%s232]
                  %262 = vst [vmem:[%s240 + $0x14] sm:%s232] %v261
                  %v263 = vld [vmem:[%s239 + $0x26] sm:%s232]
                  %264 = vst [vmem:[%s240 + $0x16] sm:%s232] %v263
                  %v265 = vld [vmem:[%s239 + $0x28] sm:%s232]
                  %266 = vst [vmem:[%s240 + $0x18] sm:%s232] %v265
                  %v267 = vld [vmem:[%s239 + $0x2a] sm:%s232]
                  %268 = vst [vmem:[%s240 + $0x1a] sm:%s232] %v267
                  %v269 = vld [vmem:[%s239 + $0x2c] sm:%s232]
                  %270 = vst [vmem:[%s240 + $0x1c] sm:%s232] %v269
                  %v271 = vld [vmem:[%s239 + $0x2e] sm:%s232]
                  %272 = vst [vmem:[%s240 + $0x1e] sm:%s232] %v271
                  %v273 = vld [vmem:[%s239 + $0x40] sm:%s232]
                  %274 = vst [vmem:[%s240 + $0x20] sm:%s232] %v273
                  %v275 = vld [vmem:[%s239 + $0x42] sm:%s232]
                  %276 = vst [vmem:[%s240 + $0x22] sm:%s232] %v275
                  %v277 = vld [vmem:[%s239 + $0x44] sm:%s232]
                  %278 = vst [vmem:[%s240 + $0x24] sm:%s232] %v277
                  %v279 = vld [vmem:[%s239 + $0x46] sm:%s232]
                  %280 = vst [vmem:[%s240 + $0x26] sm:%s232] %v279
                  %v281 = vld [vmem:[%s239 + $0x48] sm:%s232]
                  %282 = vst [vmem:[%s240 + $0x28] sm:%s232] %v281
                  %v283 = vld [vmem:[%s239 + $0x4a] sm:%s232]
                  %284 = vst [vmem:[%s240 + $0x2a] sm:%s232] %v283
                  %v285 = vld [vmem:[%s239 + $0x4c] sm:%s232]
                  %286 = vst [vmem:[%s240 + $0x2c] sm:%s232] %v285
                  %v287 = vld [vmem:[%s239 + $0x4e] sm:%s232]
                  %288 = vst [vmem:[%s240 + $0x2e] sm:%s232] %v287
                  %v289 = vld [vmem:[%s239 + $0x60] sm:%s232]
                  %290 = vst [vmem:[%s240 + $0x30] sm:%s232] %v289
                  %v291 = vld [vmem:[%s239 + $0x62] sm:%s232]
                  %292 = vst [vmem:[%s240 + $0x32] sm:%s232] %v291
                  %v293 = vld [vmem:[%s239 + $0x64] sm:%s232]
                  %294 = vst [vmem:[%s240 + $0x34] sm:%s232] %v293
                  %v295 = vld [vmem:[%s239 + $0x66] sm:%s232]
                  %296 = vst [vmem:[%s240 + $0x36] sm:%s232] %v295
                  %v297 = vld [vmem:[%s239 + $0x68] sm:%s232]
                  %298 = vst [vmem:[%s240 + $0x38] sm:%s232] %v297
                  %v299 = vld [vmem:[%s239 + $0x6a] sm:%s232]
                  %300 = vst [vmem:[%s240 + $0x3a] sm:%s232] %v299
                  %v301 = vld [vmem:[%s239 + $0x6c] sm:%s232]
                  %302 = vst [vmem:[%s240 + $0x3c] sm:%s232] %v301
                  %v303 = vld [vmem:[%s239 + $0x6e] sm:%s232]
                  %304 = vst [vmem:[%s240 + $0x3e] sm:%s232] %v303
                $region63: #{tpu_custom_call.1} parent=50 // loop_footer
                  %s238 = sadd.s32 1, %s234
                $region64: #{tpu_custom_call.1} parent=50 // loop_footer_branch
                  %233 = sbr.rel target = $region60
                $region65: #{tpu_custom_call.1} parent=50 // loop_exit
                  _
              $region51: #{tpu_custom_call.1} parent=35 // pred_fallthru
                _
            $region36: #{tpu_custom_call.1} parent=31 // pred_fallthru
              _
            // Predicated region
            $region37: #{tpu_custom_call.1} parent=31 // pred_check
              _
            $region38: #{tpu_custom_call.1} parent=31 // pred_check_branch
              %146 = sbr.rel (0) target = $region40
            $region39: #{tpu_custom_call.1} parent=31 // pred_region
              %s148 = ssub.s32 4, 1
              loop: start=0, step=1, limit=1
              $region41: #{tpu_custom_call.1} parent=39 // loop_pre_header
                _
              $region42: #{tpu_custom_call.1} parent=39 // loop_header
                %s150 = sphi 0, %s154
                %p151 = scmp.ge.s32.totalorder %s150, 1
                %s155 = sphi %s140, %s140
                %s156 = sphi %s137, %s137
              $region43: #{tpu_custom_call.1} parent=39 // loop_header_branch
                %153 = sbr.rel (%p151) target = $region47
              $region44: #{tpu_custom_call.1} parent=39 // loop_body
                %v157 = vld [vmem:[%s155] sm:%s148]
                %158 = vst [vmem:[%s156] sm:%s148] %v157
                %v159 = vld [vmem:[%s155 + $0x2] sm:%s148]
                %160 = vst [vmem:[%s156 + $0x2] sm:%s148] %v159
                %v161 = vld [vmem:[%s155 + $0x4] sm:%s148]
                %162 = vst [vmem:[%s156 + $0x4] sm:%s148] %v161
                %v163 = vld [vmem:[%s155 + $0x6] sm:%s148]
                %164 = vst [vmem:[%s156 + $0x6] sm:%s148] %v163
                %v165 = vld [vmem:[%s155 + $0x8] sm:%s148]
                %166 = vst [vmem:[%s156 + $0x8] sm:%s148] %v165
                %v167 = vld [vmem:[%s155 + $0xa] sm:%s148]
                %168 = vst [vmem:[%s156 + $0xa] sm:%s148] %v167
                %v169 = vld [vmem:[%s155 + $0xc] sm:%s148]
                %170 = vst [vmem:[%s156 + $0xc] sm:%s148] %v169
                %v171 = vld [vmem:[%s155 + $0xe] sm:%s148]
                %172 = vst [vmem:[%s156 + $0xe] sm:%s148] %v171
                %v173 = vld [vmem:[%s155 + $0x20] sm:%s148]
                %174 = vst [vmem:[%s156 + $0x10] sm:%s148] %v173
                %v175 = vld [vmem:[%s155 + $0x22] sm:%s148]
                %176 = vst [vmem:[%s156 + $0x12] sm:%s148] %v175
                %v177 = vld [vmem:[%s155 + $0x24] sm:%s148]
                %178 = vst [vmem:[%s156 + $0x14] sm:%s148] %v177
                %v179 = vld [vmem:[%s155 + $0x26] sm:%s148]
                %180 = vst [vmem:[%s156 + $0x16] sm:%s148] %v179
                %v181 = vld [vmem:[%s155 + $0x28] sm:%s148]
                %182 = vst [vmem:[%s156 + $0x18] sm:%s148] %v181
                %v183 = vld [vmem:[%s155 + $0x2a] sm:%s148]
                %184 = vst [vmem:[%s156 + $0x1a] sm:%s148] %v183
                %v185 = vld [vmem:[%s155 + $0x2c] sm:%s148]
                %186 = vst [vmem:[%s156 + $0x1c] sm:%s148] %v185
                %v187 = vld [vmem:[%s155 + $0x2e] sm:%s148]
                %188 = vst [vmem:[%s156 + $0x1e] sm:%s148] %v187
                %v189 = vld [vmem:[%s155 + $0x40] sm:%s148]
                %190 = vst [vmem:[%s156 + $0x20] sm:%s148] %v189
                %v191 = vld [vmem:[%s155 + $0x42] sm:%s148]
                %192 = vst [vmem:[%s156 + $0x22] sm:%s148] %v191
                %v193 = vld [vmem:[%s155 + $0x44] sm:%s148]
                %194 = vst [vmem:[%s156 + $0x24] sm:%s148] %v193
                %v195 = vld [vmem:[%s155 + $0x46] sm:%s148]
                %196 = vst [vmem:[%s156 + $0x26] sm:%s148] %v195
                %v197 = vld [vmem:[%s155 + $0x48] sm:%s148]
                %198 = vst [vmem:[%s156 + $0x28] sm:%s148] %v197
                %v199 = vld [vmem:[%s155 + $0x4a] sm:%s148]
                %200 = vst [vmem:[%s156 + $0x2a] sm:%s148] %v199
                %v201 = vld [vmem:[%s155 + $0x4c] sm:%s148]
                %202 = vst [vmem:[%s156 + $0x2c] sm:%s148] %v201
                %v203 = vld [vmem:[%s155 + $0x4e] sm:%s148]
                %204 = vst [vmem:[%s156 + $0x2e] sm:%s148] %v203
                %v205 = vld [vmem:[%s155 + $0x60] sm:%s148]
                %206 = vst [vmem:[%s156 + $0x30] sm:%s148] %v205
                %v207 = vld [vmem:[%s155 + $0x62] sm:%s148]
                %208 = vst [vmem:[%s156 + $0x32] sm:%s148] %v207
                %v209 = vld [vmem:[%s155 + $0x64] sm:%s148]
                %210 = vst [vmem:[%s156 + $0x34] sm:%s148] %v209
                %v211 = vld [vmem:[%s155 + $0x66] sm:%s148]
                %212 = vst [vmem:[%s156 + $0x36] sm:%s148] %v211
                %v213 = vld [vmem:[%s155 + $0x68] sm:%s148]
                %214 = vst [vmem:[%s156 + $0x38] sm:%s148] %v213
                %v215 = vld [vmem:[%s155 + $0x6a] sm:%s148]
                %216 = vst [vmem:[%s156 + $0x3a] sm:%s148] %v215
                %v217 = vld [vmem:[%s155 + $0x6c] sm:%s148]
                %218 = vst [vmem:[%s156 + $0x3c] sm:%s148] %v217
                %v219 = vld [vmem:[%s155 + $0x6e] sm:%s148]
                %220 = vst [vmem:[%s156 + $0x3e] sm:%s148] %v219
              $region45: #{tpu_custom_call.1} parent=39 // loop_footer
                %s154 = sadd.s32 1, %s150
              $region46: #{tpu_custom_call.1} parent=39 // loop_footer_branch
                %149 = sbr.rel target = $region42
              $region47: #{tpu_custom_call.1} parent=39 // loop_exit
                _
            $region40: #{tpu_custom_call.1} parent=31 // pred_fallthru
              _
          $region32: #{tpu_custom_call.1} parent=27 // pred_fallthru
            _
          %305 = vnop
        $region28: #{tpu_custom_call.1} parent=23 // pred_fallthru
          _
      $region24: #{tpu_custom_call.1} parent=5 // pred_fallthru
        _
      %p306 = scmp.le.s32.totalorder 1, %s12
      %p307 = scmp.lt.s32.totalorder %s12, 3
      %p308 = pnand %p306, %p307
      %p309 = pneg %p308
      // Predicated region
      $region66: #{tpu_custom_call.1} parent=5 // pred_check
        _
      $region67: #{tpu_custom_call.1} parent=5 // pred_check_branch
        %311 = sbr.rel (%p308) target = $region69
      $region68: #{tpu_custom_call.1} parent=5 // pred_region
        %s312 = ssub.s32 %s12, 1
        %s313 = sand.u32 %s25, 1
        %s314 = sand.u32 %s25, 1
        %s315 = smul.addr %s314, 64
        %s316 = scalar_lea.vmem [#allocation2], %s315
        // Predicated region
        $region70: #{tpu_custom_call.1} parent=68 // pred_check
          %p317 = pneg %p38
        $region71: #{tpu_custom_call.1} parent=68 // pred_check_branch
          %319 = sbr.rel (%p317) target = $region73
        $region72: #{tpu_custom_call.1} parent=68 // pred_region
          _
        $region73: #{tpu_custom_call.1} parent=68 // pred_fallthru
          _
        %s320 = sand.u32 %s25, 1
        %s321 = sand.u32 %s25, 1
        %s322 = smul.addr %s321, 64
        %s323 = scalar_lea.vmem [#allocation2], %s322
        %p324 = pneg %p38
        %p325 = pneg %p35
        %p326 = pneg %p59
        %p327 = pneg %p56
        %p328 = pneg %p80
        %p329 = pneg %p77
        %p330 = pneg %p106
        %p331 = pneg %p103
        %s332 = sand.u32 %s93, 1
        %s333 = scalar_lea.sflag [#allocation4], %s332
        %s334 = sand.u32 %s93, 1
        %s335 = smul.addr %s334, 16
        %s336 = scalar_lea.vmem [#allocation3], %s335
        %s337 = smul.u32 8, %s17
        %s338 = smul.u32 2, %s17
        %v340 = vld [vmem:[%s316] sm:$0x3]
        %v341 = vld [vmem:[%s316 + $0x2] sm:$0x3]
        %v342 = vld [vmem:[%s316 + $0x4] sm:$0x3]
        %v343 = vld [vmem:[%s316 + $0x6] sm:$0x3]
        %v344 = vld [vmem:[%s316 + $0x8] sm:$0x3]
        %v345 = vld [vmem:[%s316 + $0xa] sm:$0x3]
        %v346 = vld [vmem:[%s316 + $0xc] sm:$0x3]
        %v347 = vld [vmem:[%s316 + $0xe] sm:$0x3]
        %v348 = vld [vmem:[%s316 + $0x10] sm:$0x3]
        %v349 = vld [vmem:[%s316 + $0x12] sm:$0x3]
        %v350 = vld [vmem:[%s316 + $0x14] sm:$0x3]
        %v351 = vld [vmem:[%s316 + $0x16] sm:$0x3]
        %v352 = vld [vmem:[%s316 + $0x18] sm:$0x3]
        %v353 = vld [vmem:[%s316 + $0x1a] sm:$0x3]
        %v354 = vld [vmem:[%s316 + $0x1c] sm:$0x3]
        %v355 = vld [vmem:[%s316 + $0x1e] sm:$0x3]
        %v356 = vld [vmem:[%s316 + $0x20] sm:$0x3]
        %v357 = vld [vmem:[%s316 + $0x22] sm:$0x3]
        %v358 = vld [vmem:[%s316 + $0x24] sm:$0x3]
        %v359 = vld [vmem:[%s316 + $0x26] sm:$0x3]
        %v360 = vld [vmem:[%s316 + $0x28] sm:$0x3]
        %v361 = vld [vmem:[%s316 + $0x2a] sm:$0x3]
        %v362 = vld [vmem:[%s316 + $0x2c] sm:$0x3]
        %v363 = vld [vmem:[%s316 + $0x2e] sm:$0x3]
        %v364 = vld [vmem:[%s316 + $0x30] sm:$0x3]
        %v365 = vld [vmem:[%s316 + $0x32] sm:$0x3]
        %v366 = vld [vmem:[%s316 + $0x34] sm:$0x3]
        %v367 = vld [vmem:[%s316 + $0x36] sm:$0x3]
        %v368 = vld [vmem:[%s316 + $0x38] sm:$0x3]
        %v369 = vld [vmem:[%s316 + $0x3a] sm:$0x3]
        %v370 = vld [vmem:[%s316 + $0x3c] sm:$0x3]
        %v371 = vld [vmem:[%s316 + $0x3e] sm:$0x3]
        %v372 = vunpack.c.0.s8 %v340
        %v373 = vunpack.c.0.s8 %v341
        %v374 = vunpack.c.0.s8 %v342
        %v375 = vunpack.c.0.s8 %v343
        %v376 = vunpack.c.0.s8 %v344
        %v377 = vunpack.c.0.s8 %v345
        %v378 = vunpack.c.0.s8 %v346
        %v379 = vunpack.c.0.s8 %v347
        %v380 = vunpack.c.0.s8 %v348
        %v381 = vunpack.c.0.s8 %v349
        %v382 = vunpack.c.0.s8 %v350
        %v383 = vunpack.c.0.s8 %v351
        %v384 = vunpack.c.0.s8 %v352
        %v385 = vunpack.c.0.s8 %v353
        %v386 = vunpack.c.0.s8 %v354
        %v387 = vunpack.c.0.s8 %v355
        %v388 = vunpack.c.0.s8 %v356
        %v389 = vunpack.c.0.s8 %v357
        %v390 = vunpack.c.0.s8 %v358
        %v391 = vunpack.c.0.s8 %v359
        %v392 = vunpack.c.0.s8 %v360
        %v393 = vunpack.c.0.s8 %v361
        %v394 = vunpack.c.0.s8 %v362
        %v395 = vunpack.c.0.s8 %v363
        %v396 = vunpack.c.0.s8 %v364
        %v397 = vunpack.c.0.s8 %v365
        %v398 = vunpack.c.0.s8 %v366
        %v399 = vunpack.c.0.s8 %v367
        %v400 = vunpack.c.0.s8 %v368
        %v401 = vunpack.c.0.s8 %v369
        %v402 = vunpack.c.0.s8 %v370
        %v403 = vunpack.c.0.s8 %v371
        %v404 = vcvt.s32.f32 %v372
        %v405 = vcvt.s32.f32 %v373
        %v406 = vcvt.s32.f32 %v374
        %v407 = vcvt.s32.f32 %v375
        %v408 = vcvt.s32.f32 %v376
        %v409 = vcvt.s32.f32 %v377
        %v410 = vcvt.s32.f32 %v378
        %v411 = vcvt.s32.f32 %v379
        %v412 = vcvt.s32.f32 %v380
        %v413 = vcvt.s32.f32 %v381
        %v414 = vcvt.s32.f32 %v382
        %v415 = vcvt.s32.f32 %v383
        %v416 = vcvt.s32.f32 %v384
        %v417 = vcvt.s32.f32 %v385
        %v418 = vcvt.s32.f32 %v386
        %v419 = vcvt.s32.f32 %v387
        %v420 = vcvt.s32.f32 %v388
        %v421 = vcvt.s32.f32 %v389
        %v422 = vcvt.s32.f32 %v390
        %v423 = vcvt.s32.f32 %v391
        %v424 = vcvt.s32.f32 %v392
        %v425 = vcvt.s32.f32 %v393
        %v426 = vcvt.s32.f32 %v394
        %v427 = vcvt.s32.f32 %v395
        %v428 = vcvt.s32.f32 %v396
        %v429 = vcvt.s32.f32 %v397
        %v430 = vcvt.s32.f32 %v398
        %v431 = vcvt.s32.f32 %v399
        %v432 = vcvt.s32.f32 %v400
        %v433 = vcvt.s32.f32 %v401
        %v434 = vcvt.s32.f32 %v402
        %v435 = vcvt.s32.f32 %v403
        %v436 = vpack.c.bf16 %v405, %v404
        %v437 = vpack.c.bf16 %v407, %v406
        %v438 = vpack.c.bf16 %v409, %v408
        %v439 = vpack.c.bf16 %v411, %v410
        %v440 = vpack.c.bf16 %v413, %v412
        %v441 = vpack.c.bf16 %v415, %v414
        %v442 = vpack.c.bf16 %v417, %v416
        %v443 = vpack.c.bf16 %v419, %v418
        %v444 = vpack.c.bf16 %v421, %v420
        %v445 = vpack.c.bf16 %v423, %v422
        %v446 = vpack.c.bf16 %v425, %v424
        %v447 = vpack.c.bf16 %v427, %v426
        %v448 = vpack.c.bf16 %v429, %v428
        %v449 = vpack.c.bf16 %v431, %v430
        %v450 = vpack.c.bf16 %v433, %v432
        %v451 = vpack.c.bf16 %v435, %v434
        %v452 = vld [vmem:[%s1] sm:$0xf]
        %vm453 = vcmask 64512
        %v455 = vsel %vm453, %v436, 0
        %v458 = vsel %vm453, %v437, 0
        %v461 = vsel %vm453, %v438, 0
        %v464 = vsel %vm453, %v439, 0
        %v467 = vsel %vm453, %v440, 0
        %v470 = vsel %vm453, %v441, 0
        %v473 = vsel %vm453, %v442, 0
        %v476 = vsel %vm453, %v443, 0
        %v479 = vsel %vm453, %v444, 0
        %v482 = vsel %vm453, %v445, 0
        %v485 = vsel %vm453, %v446, 0
        %v488 = vsel %vm453, %v447, 0
        %v491 = vsel %vm453, %v448, 0
        %v494 = vsel %vm453, %v449, 0
        %v497 = vsel %vm453, %v450, 0
        %v500 = vsel %vm453, %v451, 0
        %vm502 = vcmask 1043456
        %v504 = vsel %vm502, %v452, 0
        %506 = vmatpush.bf16.msra.mxu0 0
        %507 = vmatpush.bf16.msra.mxu0 0
        %508 = vmatpush.bf16.msra.mxu0 0
        %509 = vmatpush.bf16.msra.mxu0 0
        %510 = vmatpush.bf16.msra.mxu0 0
        %511 = vmatpush.bf16.msra.mxu0 0
        %512 = vmatpush.bf16.msra.mxu0 0
        %513 = vmatpush.bf16.msra.mxu0 %v504
        %514 = vmatmul.bf16.gmra.mxu0 %v455
        %v515 = vpop.f32.mrf.mxu0
        %v516 = vadd.f32 0.0, %v515
        %v517 = vpop.f32.mrf.mxu0
        %v518 = vadd.f32 0.0, %v517
        %519 = vmatmul.bf16.gmra.mxu0 %v458
        %v520 = vpop.f32.mrf.mxu0
        %v521 = vadd.f32 0.0, %v520
        %v522 = vpop.f32.mrf.mxu0
        %v523 = vadd.f32 0.0, %v522
        %524 = vmatmul.bf16.gmra.mxu0 %v461
        %v525 = vpop.f32.mrf.mxu0
        %v526 = vadd.f32 0.0, %v525
        %v527 = vpop.f32.mrf.mxu0
        %v528 = vadd.f32 0.0, %v527
        %529 = vmatmul.bf16.gmra.mxu0 %v464
        %v530 = vpop.f32.mrf.mxu0
        %v531 = vadd.f32 0.0, %v530
        %v532 = vpop.f32.mrf.mxu0
        %v533 = vadd.f32 0.0, %v532
        %534 = vmatmul.bf16.gmra.mxu0 %v467
        %v535 = vpop.f32.mrf.mxu0
        %v536 = vadd.f32 0.0, %v535
        %v537 = vpop.f32.mrf.mxu0
        %v538 = vadd.f32 0.0, %v537
        %539 = vmatmul.bf16.gmra.mxu0 %v470
        %v540 = vpop.f32.mrf.mxu0
        %v541 = vadd.f32 0.0, %v540
        %v542 = vpop.f32.mrf.mxu0
        %v543 = vadd.f32 0.0, %v542
        %544 = vmatmul.bf16.gmra.mxu0 %v473
        %v545 = vpop.f32.mrf.mxu0
        %v546 = vadd.f32 0.0, %v545
        %v547 = vpop.f32.mrf.mxu0
        %v548 = vadd.f32 0.0, %v547
        %549 = vmatmul.bf16.gmra.mxu0 %v476
        %v550 = vpop.f32.mrf.mxu0
        %v551 = vadd.f32 0.0, %v550
        %v552 = vpop.f32.mrf.mxu0
        %v553 = vadd.f32 0.0, %v552
        %554 = vmatmul.bf16.gmra.mxu0 %v479
        %v555 = vpop.f32.mrf.mxu0
        %v556 = vadd.f32 0.0, %v555
        %v557 = vpop.f32.mrf.mxu0
        %v558 = vadd.f32 0.0, %v557
        %559 = vmatmul.bf16.gmra.mxu0 %v482
        %v560 = vpop.f32.mrf.mxu0
        %v561 = vadd.f32 0.0, %v560
        %v562 = vpop.f32.mrf.mxu0
        %v563 = vadd.f32 0.0, %v562
        %564 = vmatmul.bf16.gmra.mxu0 %v485
        %v565 = vpop.f32.mrf.mxu0
        %v566 = vadd.f32 0.0, %v565
        %v567 = vpop.f32.mrf.mxu0
        %v568 = vadd.f32 0.0, %v567
        %569 = vmatmul.bf16.gmra.mxu0 %v488
        %v570 = vpop.f32.mrf.mxu0
        %v571 = vadd.f32 0.0, %v570
        %v572 = vpop.f32.mrf.mxu0
        %v573 = vadd.f32 0.0, %v572
        %574 = vmatmul.bf16.gmra.mxu0 %v491
        %v575 = vpop.f32.mrf.mxu0
        %v576 = vadd.f32 0.0, %v575
        %v577 = vpop.f32.mrf.mxu0
        %v578 = vadd.f32 0.0, %v577
        %579 = vmatmul.bf16.gmra.mxu0 %v494
        %v580 = vpop.f32.mrf.mxu0
        %v581 = vadd.f32 0.0, %v580
        %v582 = vpop.f32.mrf.mxu0
        %v583 = vadd.f32 0.0, %v582
        %584 = vmatmul.bf16.gmra.mxu0 %v497
        %v585 = vpop.f32.mrf.mxu0
        %v586 = vadd.f32 0.0, %v585
        %v587 = vpop.f32.mrf.mxu0
        %v588 = vadd.f32 0.0, %v587
        %589 = vmatmul.bf16.gmra.mxu0 %v500
        %v590 = vpop.f32.mrf.mxu0
        %v591 = vadd.f32 0.0, %v590
        %v592 = vpop.f32.mrf.mxu0
        %v593 = vadd.f32 0.0, %v592
        %594 = vdwg.mxu0
        %v595 = vld [vmem:[%s2] sm:$0x1]
        %v597 = vperm.slane %v595, 0
        %v599 = vmul.f32 %v516, %v597
        %v600 = vmul.f32 %v518, %v597
        %v601 = vmul.f32 %v521, %v597
        %v602 = vmul.f32 %v523, %v597
        %v603 = vmul.f32 %v526, %v597
        %v604 = vmul.f32 %v528, %v597
        %v605 = vmul.f32 %v531, %v597
        %v606 = vmul.f32 %v533, %v597
        %v607 = vmul.f32 %v536, %v597
        %v608 = vmul.f32 %v538, %v597
        %v609 = vmul.f32 %v541, %v597
        %v610 = vmul.f32 %v543, %v597
        %v611 = vmul.f32 %v546, %v597
        %v612 = vmul.f32 %v548, %v597
        %v613 = vmul.f32 %v551, %v597
        %v614 = vmul.f32 %v553, %v597
        %v615 = vmul.f32 %v556, %v597
        %v616 = vmul.f32 %v558, %v597
        %v617 = vmul.f32 %v561, %v597
        %v618 = vmul.f32 %v563, %v597
        %v619 = vmul.f32 %v566, %v597
        %v620 = vmul.f32 %v568, %v597
        %v621 = vmul.f32 %v571, %v597
        %v622 = vmul.f32 %v573, %v597
        %v623 = vmul.f32 %v576, %v597
        %v624 = vmul.f32 %v578, %v597
        %v625 = vmul.f32 %v581, %v597
        %v626 = vmul.f32 %v583, %v597
        %v627 = vmul.f32 %v586, %v597
        %v628 = vmul.f32 %v588, %v597
        %v629 = vmul.f32 %v591, %v597
        %v630 = vmul.f32 %v593, %v597
        %v631 = vround.ne.pseudo %v599
        %v632 = vround.ne.pseudo %v600
        %v633 = vround.ne.pseudo %v601
        %v634 = vround.ne.pseudo %v602
        %v635 = vround.ne.pseudo %v603
        %v636 = vround.ne.pseudo %v604
        %v637 = vround.ne.pseudo %v605
        %v638 = vround.ne.pseudo %v606
        %v639 = vround.ne.pseudo %v607
        %v640 = vround.ne.pseudo %v608
        %v641 = vround.ne.pseudo %v609
        %v642 = vround.ne.pseudo %v610
        %v643 = vround.ne.pseudo %v611
        %v644 = vround.ne.pseudo %v612
        %v645 = vround.ne.pseudo %v613
        %v646 = vround.ne.pseudo %v614
        %v647 = vround.ne.pseudo %v615
        %v648 = vround.ne.pseudo %v616
        %v649 = vround.ne.pseudo %v617
        %v650 = vround.ne.pseudo %v618
        %v651 = vround.ne.pseudo %v619
        %v652 = vround.ne.pseudo %v620
        %v653 = vround.ne.pseudo %v621
        %v654 = vround.ne.pseudo %v622
        %v655 = vround.ne.pseudo %v623
        %v656 = vround.ne.pseudo %v624
        %v657 = vround.ne.pseudo %v625
        %v658 = vround.ne.pseudo %v626
        %v659 = vround.ne.pseudo %v627
        %v660 = vround.ne.pseudo %v628
        %v661 = vround.ne.pseudo %v629
        %v662 = vround.ne.pseudo %v630
        %v663 = vmax.f32 %v631, -127.0
        %v664 = vmax.f32 %v632, -127.0
        %v665 = vmax.f32 %v633, -127.0
        %v666 = vmax.f32 %v634, -127.0
        %v667 = vmax.f32 %v635, -127.0
        %v668 = vmax.f32 %v636, -127.0
        %v669 = vmax.f32 %v637, -127.0
        %v670 = vmax.f32 %v638, -127.0
        %v671 = vmax.f32 %v639, -127.0
        %v672 = vmax.f32 %v640, -127.0
        %v673 = vmax.f32 %v641, -127.0
        %v674 = vmax.f32 %v642, -127.0
        %v675 = vmax.f32 %v643, -127.0
        %v676 = vmax.f32 %v644, -127.0
        %v677 = vmax.f32 %v645, -127.0
        %v678 = vmax.f32 %v646, -127.0
        %v679 = vmax.f32 %v647, -127.0
        %v680 = vmax.f32 %v648, -127.0
        %v681 = vmax.f32 %v649, -127.0
        %v682 = vmax.f32 %v650, -127.0
        %v683 = vmax.f32 %v651, -127.0
        %v684 = vmax.f32 %v652, -127.0
        %v685 = vmax.f32 %v653, -127.0
        %v686 = vmax.f32 %v654, -127.0
        %v687 = vmax.f32 %v655, -127.0
        %v688 = vmax.f32 %v656, -127.0
        %v689 = vmax.f32 %v657, -127.0
        %v690 = vmax.f32 %v658, -127.0
        %v691 = vmax.f32 %v659, -127.0
        %v692 = vmax.f32 %v660, -127.0
        %v693 = vmax.f32 %v661, -127.0
        %v694 = vmax.f32 %v662, -127.0
        %v695 = vmin.f32 %v663, 127.0
        %v696 = vmin.f32 %v664, 127.0
        %v697 = vmin.f32 %v665, 127.0
        %v698 = vmin.f32 %v666, 127.0
        %v699 = vmin.f32 %v667, 127.0
        %v700 = vmin.f32 %v668, 127.0
        %v701 = vmin.f32 %v669, 127.0
        %v702 = vmin.f32 %v670, 127.0
        %v703 = vmin.f32 %v671, 127.0
        %v704 = vmin.f32 %v672, 127.0
        %v705 = vmin.f32 %v673, 127.0
        %v706 = vmin.f32 %v674, 127.0
        %v707 = vmin.f32 %v675, 127.0
        %v708 = vmin.f32 %v676, 127.0
        %v709 = vmin.f32 %v677, 127.0
        %v710 = vmin.f32 %v678, 127.0
        %v711 = vmin.f32 %v679, 127.0
        %v712 = vmin.f32 %v680, 127.0
        %v713 = vmin.f32 %v681, 127.0
        %v714 = vmin.f32 %v682, 127.0
        %v715 = vmin.f32 %v683, 127.0
        %v716 = vmin.f32 %v684, 127.0
        %v717 = vmin.f32 %v685, 127.0
        %v718 = vmin.f32 %v686, 127.0
        %v719 = vmin.f32 %v687, 127.0
        %v720 = vmin.f32 %v688, 127.0
        %v721 = vmin.f32 %v689, 127.0
        %v722 = vmin.f32 %v690, 127.0
        %v723 = vmin.f32 %v691, 127.0
        %v724 = vmin.f32 %v692, 127.0
        %v725 = vmin.f32 %v693, 127.0
        %v726 = vmin.f32 %v694, 127.0
        %v727 = vadd.f32 %v695, %v703
        %v728 = vadd.f32 %v696, %v704
        %v729 = vadd.f32 %v697, %v705
        %v730 = vadd.f32 %v698, %v706
        %v731 = vadd.f32 %v699, %v707
        %v732 = vadd.f32 %v700, %v708
        %v733 = vadd.f32 %v701, %v709
        %v734 = vadd.f32 %v702, %v710
        %v735 = vadd.f32 %v727, %v711
        %v736 = vadd.f32 %v728, %v712
        %v737 = vadd.f32 %v729, %v713
        %v738 = vadd.f32 %v730, %v714
        %v739 = vadd.f32 %v731, %v715
        %v740 = vadd.f32 %v732, %v716
        %v741 = vadd.f32 %v733, %v717
        %v742 = vadd.f32 %v734, %v718
        %v743 = vadd.f32 %v735, %v719
        %v744 = vadd.f32 %v736, %v720
        %v745 = vadd.f32 %v737, %v721
        %v746 = vadd.f32 %v738, %v722
        %v747 = vadd.f32 %v739, %v723
        %v748 = vadd.f32 %v740, %v724
        %v749 = vadd.f32 %v741, %v725
        %v750 = vadd.f32 %v742, %v726
        %v751 = vmul.f32 %v743, 0.25
        %v752 = vmul.f32 %v744, 0.25
        %v753 = vmul.f32 %v745, 0.25
        %v754 = vmul.f32 %v746, 0.25
        %v755 = vmul.f32 %v747, 0.25
        %v756 = vmul.f32 %v748, 0.25
        %v757 = vmul.f32 %v749, 0.25
        %v758 = vmul.f32 %v750, 0.25
        %v759 = vadd.f32 %v751, 0.5
        %v760 = vadd.f32 %v752, 0.5
        %v761 = vadd.f32 %v753, 0.5
        %v762 = vadd.f32 %v754, 0.5
        %v763 = vadd.f32 %v755, 0.5
        %v764 = vadd.f32 %v756, 0.5
        %v765 = vadd.f32 %v757, 0.5
        %v766 = vadd.f32 %v758, 0.5
        %v767 = vfloor.f32 %v759
        %v768 = vfloor.f32 %v760
        %v769 = vfloor.f32 %v761
        %v770 = vfloor.f32 %v762
        %v771 = vfloor.f32 %v763
        %v772 = vfloor.f32 %v764
        %v773 = vfloor.f32 %v765
        %v774 = vfloor.f32 %v766
        %v775 = vmax.f32 %v767, -128.0
        %v776 = vmax.f32 %v768, -128.0
        %v777 = vmax.f32 %v769, -128.0
        %v778 = vmax.f32 %v770, -128.0
        %v779 = vmax.f32 %v771, -128.0
        %v780 = vmax.f32 %v772, -128.0
        %v781 = vmax.f32 %v773, -128.0
        %v782 = vmax.f32 %v774, -128.0
        %v783 = vmin.f32 %v775, 127.0
        %v784 = vmin.f32 %v776, 127.0
        %v785 = vmin.f32 %v777, 127.0
        %v786 = vmin.f32 %v778, 127.0
        %v787 = vmin.f32 %v779, 127.0
        %v788 = vmin.f32 %v780, 127.0
        %v789 = vmin.f32 %v781, 127.0
        %v790 = vmin.f32 %v782, 127.0
        %v791 = vcvt.f32.s32.to.zero.pseudo %v783
        %v792 = vcvt.f32.s32.to.zero.pseudo %v784
        %v793 = vcvt.f32.s32.to.zero.pseudo %v785
        %v794 = vcvt.f32.s32.to.zero.pseudo %v786
        %v795 = vcvt.f32.s32.to.zero.pseudo %v787
        %v796 = vcvt.f32.s32.to.zero.pseudo %v788
        %v797 = vcvt.f32.s32.to.zero.pseudo %v789
        %v798 = vcvt.f32.s32.to.zero.pseudo %v790
        %v799 = vpack.c.b16 %v792, %v791
        %v800 = vpack.c.b16 %v794, %v793
        %v801 = vpack.c.b8 %v800, %v799
        %v802 = vpack.c.b16 %v796, %v795
        %v803 = vpack.c.b16 %v798, %v797
        %v804 = vpack.c.b8 %v803, %v802
        %805 = vst [vmem:[%s336] sm:$0xff] %v801
        %806 = vst [vmem:[%s336 + $0x8] sm:$0xff] %v804
        %s807 = sand.u32 %s93, 1
        %s808 = scalar_lea.sflag [#allocation4], %s807
        %s809 = sand.u32 %s93, 1
        %s810 = smul.addr %s809, 16
        %s811 = scalar_lea.vmem [#allocation3], %s810
        // Predicated region
        $region74: #{tpu_custom_call.1} parent=68 // pred_check
          %p812 = pneg %p103
        $region75: #{tpu_custom_call.1} parent=68 // pred_check_branch
          %814 = sbr.rel (%p812) target = $region77
        $region76: #{tpu_custom_call.1} parent=68 // pred_region
          %s815 = smul.u32 2, %s17
          %817 = vsyncadd %s808, 0
          %s818 = smul.addr %s815, 8
          %s819 = scalar_lea.hbm %s3, %s818
          %s820 = sshll.u32 %s811, 4
          %s821 = int_to_ptr.vmem [resolvable:$true] %s820
          %s822 = sshll.u32 %s819, 4
          %s823 = int_to_ptr.hbm [resolvable:$true] %s822
          %828 = dma.vmem_to_hbm [thread:$0]  %s821, 256, %s823, %s808, 128, 128, 8
        $region77: #{tpu_custom_call.1} parent=68 // pred_fallthru
          _
      $region69: #{tpu_custom_call.1} parent=5 // pred_fallthru
        _
      %p829 = scmp.le.s32.totalorder 2, %s12
      // Predicated region
      $region78: #{tpu_custom_call.1} parent=5 // pred_check
        %p830 = pneg %p829
      $region79: #{tpu_custom_call.1} parent=5 // pred_check_branch
        %832 = sbr.rel (%p830) target = $region81
      $region80: #{tpu_custom_call.1} parent=5 // pred_region
        %s833 = ssub.s32 %s12, 2
        // Predicated region
        $region82: #{tpu_custom_call.1} parent=80 // pred_check
          %p834 = pneg %p109
        $region83: #{tpu_custom_call.1} parent=80 // pred_check_branch
          %836 = sbr.rel (%p834) target = $region85
        $region84: #{tpu_custom_call.1} parent=80 // pred_region
          %s837 = sand.u32 %s94, 1
          %s838 = scalar_lea.sflag [#allocation4], %s837
          %s839 = sand.u32 %s94, 1
          %s840 = smul.addr %s839, 16
          %s841 = scalar_lea.vmem [#allocation3], %s840
          %843 = dma.done %s838, 256
        $region85: #{tpu_custom_call.1} parent=80 // pred_fallthru
          _
      $region81: #{tpu_custom_call.1} parent=5 // pred_fallthru
        _
    $region6: #{tpu_custom_call.1} parent=1 // loop_footer
      %s16 = sadd.s32 1, %s12
    $region7: #{tpu_custom_call.1} parent=1 // loop_footer_branch
      %11 = sbr.rel target = $region3
    $region8: #{tpu_custom_call.1} parent=1 // loop_exit
      _
    %844 = vsyncpa [#allocation4], 1
    %s845 = scalar_lea.sflag [#allocation4], 1
    %846 = vsyncpa %s845, 1

</llo_original>
